<compile_context>
chip_gen: v7x
topology: tpu7x:2x2x1
jax: 0.10.0
libtpu: 0.0.40
codegen_flags: <defaults>
</compile_context>

<pallas_src>
import functools

import jax
import jax.numpy as jnp
from jax.experimental import pallas as pl
from jax.experimental.pallas import tpu as pltpu


def _round_up(x: int, m: int) -> int:
    return ((x + m - 1) // m) * m


def _bce_label_smooth_kernel(x_ref, y_ref, o_ref, *, factor: float, one_sided: bool,
                             n_valid: int, tile_rows: int, tiles_per_part: int):
    p = pl.program_id(0)   # partition ("parallel"; one per TensorCore on v7x)
    t = pl.program_id(1)   # reduction step within the partition ("arbitrary")

    @pl.when(t == 0)
    def _init():
        o_ref[...] = jnp.zeros_like(o_ref)

    x = x_ref[...].astype(jnp.float32)   # (tile_rows, C) predicted probabilities
    y = y_ref[...]                       # (tile_rows, C) label tensor
    tn, c = x.shape

    # --- label smoothing (scatter at argmax, without an actual scatter) ---
    amax = jnp.argmax(y, axis=1, keepdims=True)                    # (tn, 1) int32
    col = jax.lax.broadcasted_iota(jnp.int32, (tn, c), 1)          # (tn, C)
    off_val = 0.0 if one_sided else (1.0 - factor) / (c - 1)
    target = jnp.where(col == amax,
                       jnp.float32(factor),
                       jnp.float32(off_val))                       # (tn, C) f32

    # --- BCELoss terms (torch clamps each log at -100) ---
    log_x = jnp.maximum(jnp.log(x), -100.0)
    log_1mx = jnp.maximum(jnp.log(1.0 - x), -100.0)
    # -(t*log x + (1-t)*log(1-x)) refactored to save per-element VALU ops.
    loss = -(log_1mx + target * (log_x - log_1mx))                 # (tn, C)

    # Mask rows that are padding beyond the real batch size.
    row0 = (p * tiles_per_part + t) * tile_rows
    rows = row0 + jax.lax.broadcasted_iota(jnp.int32, (tn, c), 0)
    loss = jnp.where(rows < n_valid, loss, 0.0)

    # Broadcast-accumulate this tile's partial sum into the resident output block.
    o_ref[...] += jnp.sum(loss)


def binary_label_smoothing_loss(x, y, *, target_prob: float, one_sided: bool = False,
                                tile_rows: int = 512, num_parts: int = 2):
    """Pallas wrapper. x, y: (N, C) float32. Returns scalar float32 mean BCE."""
    n, c = x.shape
    assert y.shape == (n, c)

    # Tile sizing: keep 2 inputs x 2 pipeline buffers well under scoped VMEM on every
    # generation (v5e 16 MiB default, v6e 32 MiB, v7x 64 MiB physical / 32 MiB scoped).
    input_budget = 8 * 1024 * 1024                                  # bytes for input buffers
    max_rows = max(8, (input_budget // (2 * 2 * c * 4)) // 8 * 8)
    tile_n = int(min(tile_rows, max_rows, _round_up(n, 8)))

    n_tiles = pl.cdiv(n, tile_n)
    parts = int(max(1, min(num_parts, n_tiles)))                    # "parallel" partitions
    tiles_per_part = int(pl.cdiv(n_tiles, parts))
    n_pad = parts * tiles_per_part * tile_n

    if n_pad != n:
        # Benign padding; padded rows are masked out inside the kernel.
        x = jnp.pad(x, ((0, n_pad - n), (0, 0)), constant_values=0.5)
        y = jnp.pad(y, ((0, n_pad - n), (0, 0)), constant_values=0.0)

    kernel = functools.partial(
        _bce_label_smooth_kernel,
        factor=float(target_prob), one_sided=bool(one_sided),
        n_valid=int(n), tile_rows=tile_n, tiles_per_part=tiles_per_part)

    vmem_need = 2 * 2 * tile_n * c * 4 + 2 * parts * 8 * 128 * 4 + (1 << 20)
    vmem_limit = int(min(32 * 1024 * 1024, max(vmem_need, 8 * 1024 * 1024)))

    cost = pl.CostEstimate(
        flops=int(8 * n_pad * c),
        transcendentals=int(2 * n_pad * c),
        bytes_accessed=int(2 * n_pad * c * 4 + parts * 8 * 128 * 4))

    partials = pl.pallas_call(
        kernel,
        out_shape=jax.ShapeDtypeStruct((parts, 8, 128), jnp.float32),
        grid_spec=pltpu.PrefetchScalarGridSpec(
            num_scalar_prefetch=0,
            grid=(parts, tiles_per_part),
            in_specs=[
                pl.BlockSpec((tile_n, c), lambda p, t: (p * tiles_per_part + t, 0)),
                pl.BlockSpec((tile_n, c), lambda p, t: (p * tiles_per_part + t, 0)),
            ],
            out_specs=pl.BlockSpec((1, 8, 128), lambda p, t: (p, 0, 0)),
        ),
        compiler_params=pltpu.CompilerParams(
            dimension_semantics=("parallel", "arbitrary"),
            vmem_limit_bytes=vmem_limit),
        cost_estimate=cost,
    )(x, y)

    # Combine per-partition partial sums (every element of a partition's block holds
    # the same accumulated value; read lane [0, 0]).
    return jnp.sum(partials[:, 0, 0]) / jnp.float32(n * c)


def _reference(x, y, target_prob, one_sided):
    """Pure-JAX reference mirroring the PyTorch forward."""
    n, c = x.shape
    amax = jnp.argmax(y, axis=1, keepdims=True)
    col = jax.lax.broadcasted_iota(jnp.int32, (n, c), 1)
    off = 0.0 if one_sided else (1.0 - target_prob) / (c - 1)
    t = jnp.where(col == amax, target_prob, off).astype(jnp.float32)
    log_x = jnp.maximum(jnp.log(x), -100.0)
    log_1mx = jnp.maximum(jnp.log(1.0 - x), -100.0)
    return jnp.mean(-(t * log_x + (1.0 - t) * log_1mx))


if __name__ == "__main__":
    key = jax.random.PRNGKey(0)
    kx, ky = jax.random.split(key)

    # Small shapes consistent with (batch, num_labels).
    N, C = 8, 16
    target_prob = 0.9

    x = jax.nn.sigmoid(jax.random.normal(kx, (N, C), dtype=jnp.float32))
    labels = jax.random.randint(ky, (N,), 0, C)
    y = jax.nn.one_hot(labels, C, dtype=jnp.float32)

    # two-sided smoothing
    loss = binary_label_smoothing_loss(x, y, target_prob=target_prob, one_sided=False)
    jax.block_until_ready(loss)
    ref = _reference(x, y, target_prob, False)
    assert jnp.allclose(loss, ref, rtol=1e-4, atol=1e-6), (loss, ref)

    # one-sided smoothing
    loss_os = binary_label_smoothing_loss(x, y, target_prob=target_prob, one_sided=True)
    jax.block_until_ready(loss_os)
    ref_os = _reference(x, y, target_prob, True)
    assert jnp.allclose(loss_os, ref_os, rtol=1e-4, atol=1e-6), (loss_os, ref_os)

    # Larger batch exercising row tiling, edge padding/masking and the 2-partition
    # "parallel" axis (dual-TC path on v7x).
    N2, C2 = 300, 16
    kx2, ky2 = jax.random.split(jax.random.PRNGKey(0))
    x2 = jax.nn.sigmoid(jax.random.normal(kx2, (N2, C2), dtype=jnp.float32))
    labels2 = jax.random.randint(ky2, (N2,), 0, C2)
    y2 = jax.nn.one_hot(labels2, C2, dtype=jnp.float32)
    loss2 = binary_label_smoothing_loss(x2, y2, target_prob=0.8, one_sided=False,
                                        tile_rows=64, num_parts=2)
    jax.block_until_ready(loss2)
    ref2 = _reference(x2, y2, 0.8, False)
    assert jnp.allclose(loss2, ref2, rtol=1e-4, atol=1e-6), (loss2, ref2)

    print("KERNEL_OK")
</pallas_src>

<mosaic_0001>
module attributes {stable_mosaic.version = 11 : i64} {
  func.func @_bce_label_smooth_kernel(%arg0: i32, %arg1: i32, %arg2: memref<8x16xf32, #tpu.memory_space<vmem>>, %arg3: memref<8x16xf32, #tpu.memory_space<vmem>>, %arg4: memref<1x8x128xf32, #tpu.memory_space<vmem>>) attributes {dimension_semantics = [#tpu.dimension_semantics<parallel>, #tpu.dimension_semantics<arbitrary>], iteration_bounds = array<i64: 1, 1>, scalar_prefetch = 0 : i64, scratch_operands = 0 : i64, tpu.core_type = #tpu.core_type<tc>, window_params = [{transform_indices = @transform_0, window_bounds = array<i64: 8, 16>}, {transform_indices = @transform_1, window_bounds = array<i64: 8, 16>}, {transform_indices = @transform_2, window_bounds = array<i64: 1, 8, 128>}]} {
    %c0_i32 = arith.constant 0 : i32
    %0 = arith.cmpi eq, %arg1, %c0_i32 : i32
    %1 = arith.extui %0 : i1 to i32
    %c0_i32_0 = arith.constant 0 : i32
    %2 = arith.cmpi ne, %1, %c0_i32_0 : i32
    scf.if %2 {
      %cst_18 = arith.constant 0.000000e+00 : f32
      %44 = vector.broadcast %cst_18 : f32 to vector<1x8x128xf32>
      %c0_19 = arith.constant 0 : index
      %c0_20 = arith.constant 0 : index
      %c0_21 = arith.constant 0 : index
      %45 = vector.load %arg4[%c0_19, %c0_20, %c0_21] : memref<1x8x128xf32, #tpu.memory_space<vmem>>, vector<1x8x128xf32>
      tpu.vector_store %arg4[%c0_19, %c0_20, %c0_21], %44 {strides = array<i32>} : memref<1x8x128xf32, #tpu.memory_space<vmem>>, vector<1x8x128xf32>,
    } else {
    }
    %c0 = arith.constant 0 : index
    %c0_1 = arith.constant 0 : index
    %3 = vector.load %arg2[%c0, %c0_1] : memref<8x16xf32, #tpu.memory_space<vmem>>, vector<8x16xf32>
    %c0_2 = arith.constant 0 : index
    %c0_3 = arith.constant 0 : index
    %4 = vector.load %arg3[%c0_2, %c0_3] : memref<8x16xf32, #tpu.memory_space<vmem>>, vector<8x16xf32>
    %5 = tpu.reduce_index %4 {axis = 1 : i32, kind = #tpu.reduction_kind<arg_max>} : vector<8x16xf32> -> vector<8xi32>
    %6 = vector.shape_cast %5 : vector<8xi32> to vector<8x1xi32>
    %7 = tpu.iota {dimensions = array<i32: 1>} : vector<8x16xi32>
    %8 = vector.broadcast %6 : vector<8x1xi32> to vector<8x16xi32>
    %9 = arith.cmpi eq, %7, %8 : vector<8x16xi32>
    %cst = arith.constant 0.899999976 : f32
    %cst_4 = arith.constant 0.00666666683 : f32
    %10 = vector.broadcast %cst : f32 to vector<8x16xf32>
    %11 = vector.broadcast %cst_4 : f32 to vector<8x16xf32>
    %12 = arith.select %9, %10, %11 : vector<8x16xi1>, vector<8x16xf32>
    %13 = math.log %3 : vector<8x16xf32>
    %cst_5 = arith.constant -1.000000e+02 : f32
    %14 = vector.broadcast %cst_5 : f32 to vector<8x16xf32>
    %15 = arith.maximumf %13, %14 : vector<8x16xf32>
    %cst_6 = arith.constant 1.000000e+00 : f32
    %16 = vector.broadcast %cst_6 : f32 to vector<8x16xf32>
    %17 = arith.subf %16, %3 : vector<8x16xf32>
    %18 = math.log %17 : vector<8x16xf32>
    %cst_7 = arith.constant -1.000000e+02 : f32
    %19 = vector.broadcast %cst_7 : f32 to vector<8x16xf32>
    %20 = arith.maximumf %18, %19 : vector<8x16xf32>
    %21 = arith.subf %15, %20 : vector<8x16xf32>
    %22 = arith.mulf %12, %21 : vector<8x16xf32>
    %23 = arith.addf %20, %22 : vector<8x16xf32>
    %cst_8 = arith.constant 0.000000e+00 : f32
    %24 = vector.broadcast %cst_8 : f32 to vector<8x16xf32>
    %25 = arith.subf %24, %23 : vector<8x16xf32>
    %c1_i32 = arith.constant 1 : i32
    %26 = arith.muli %arg0, %c1_i32 : i32
    %27 = arith.addi %26, %arg1 : i32
    %c8_i32 = arith.constant 8 : i32
    %28 = arith.muli %27, %c8_i32 : i32
    %29 = tpu.iota {dimensions = array<i32: 0>} : vector<8x16xi32>
    %30 = vector.broadcast %28 : i32 to vector<8x16xi32>
    %31 = arith.addi %30, %29 : vector<8x16xi32>
    %c8_i32_9 = arith.constant 8 : i32
    %32 = vector.broadcast %c8_i32_9 : i32 to vector<8x16xi32>
    %33 = arith.cmpi slt, %31, %32 : vector<8x16xi32>
    %cst_10 = arith.constant 0.000000e+00 : f32
    %34 = vector.broadcast %cst_10 : f32 to vector<8x16xf32>
    %35 = arith.select %33, %25, %34 : vector<8x16xi1>, vector<8x16xf32>
    %c0_11 = arith.constant 0 : index
    %c0_12 = arith.constant 0 : index
    %c0_13 = arith.constant 0 : index
    %36 = vector.load %arg4[%c0_11, %c0_12, %c0_13] : memref<1x8x128xf32, #tpu.memory_space<vmem>>, vector<1x8x128xf32>
    %37 = vector.shape_cast %35 : vector<8x16xf32> to vector<1x8x16xf32>
    %cst_14 = arith.constant dense<0.000000e+00> : vector<1xf32>
    %38 = vector.multi_reduction <add>, %37, %cst_14 [1, 2] : vector<1x8x16xf32> to vector<1xf32>
    %39 = vector.shape_cast %38 : vector<1xf32> to vector<1x1x1xf32>
    %40 = vector.extract %39[0, 0, 0] : f32 from vector<1x1x1xf32>
    %41 = vector.broadcast %40 : f32 to vector<1x8x128xf32>
    %42 = arith.addf %36, %41 : vector<1x8x128xf32>
    %c0_15 = arith.constant 0 : index
    %c0_16 = arith.constant 0 : index
    %c0_17 = arith.constant 0 : index
    %43 = vector.load %arg4[%c0_15, %c0_16, %c0_17] : memref<1x8x128xf32, #tpu.memory_space<vmem>>, vector<1x8x128xf32>
    tpu.vector_store %arg4[%c0_15, %c0_16, %c0_17], %42 {strides = array<i32>} : memref<1x8x128xf32, #tpu.memory_space<vmem>>, vector<1x8x128xf32>,
    return
  }
  func.func @transform_0(%arg0: i32, %arg1: i32) -> (i32, i32) {
    %c1_i32 = arith.constant 1 : i32
    %0 = arith.muli %arg0, %c1_i32 : i32
    %1 = arith.addi %0, %arg1 : i32
    %c0_i32 = arith.constant 0 : i32
    %c0_i32_0 = arith.constant 0 : i32
    return %1, %c0_i32 : i32, i32
  }
  func.func @transform_1(%arg0: i32, %arg1: i32) -> (i32, i32) {
    %c1_i32 = arith.constant 1 : i32
    %0 = arith.muli %arg0, %c1_i32 : i32
    %1 = arith.addi %0, %arg1 : i32
    %c0_i32 = arith.constant 0 : i32
    %c0_i32_0 = arith.constant 0 : i32
    return %1, %c0_i32 : i32, i32
  }
  func.func @transform_2(%arg0: i32, %arg1: i32) -> (i32, i32, i32) {
    %c0_i32 = arith.constant 0 : i32
    %c0_i32_0 = arith.constant 0 : i32
    %c0_i32_1 = arith.constant 0 : i32
    return %arg0, %c0_i32, %c0_i32_0 : i32, i32, i32
  }
}

</mosaic_0001>

<llo_original>
// kernel: tpu_custom_call.1
$region0: #{tpu_custom_call.1}
  #allocation0 [shape = 'u32[]', space=smem, size = 0x4, offset = 0x4, fixed_abs, tag = 'smem constant byte address 0x4 - core index']
  #allocation1 [shape = 'u32[144,128]{1,0:T(1,128)}', space=vmem, size = 0x12000, scoped, tag = 'internal scratch']
  %s0 = inlined_call_operand.hbm [shape: f32[8,16], index: 0, kind: input, shape index: {}]
  %s1 = inlined_call_operand.hbm [shape: f32[8,16], index: 1, kind: input, shape index: {}]
  %s2 = inlined_call_operand.hbm [shape: f32[1,8,128], index: 2, kind: output, shape index: {}]
  %s3 = sld [smem:[#allocation0]]
  $region30: #{tpu_custom_call.1} parent=0
    _
  %s5 = ssub.s32 1, %s3
  %s6 = scalar_select 0, %s5, %s3
  $region1: #{tpu_custom_call.1} parent=0
    #allocation2 [shape = 'u8[4096]{0}', space=vmem, size = 0x1000, scoped, tag = 'input window, operand 0, single buffered']
    #allocation3 [shape = 's32[1]{0}', space=sflag, size = 0x4, scoped, tag = 'scoped memory for tpu_custom_call.1']
    #allocation4 [shape = 's32[1]{0}', space=sflag, size = 0x4, scoped, tag = 'scoped memory for tpu_custom_call.1']
    #allocation5 [shape = 'u8[4096]{0}', space=vmem, size = 0x1000, scoped, tag = 'input window, operand 1, single buffered']
    #allocation6 [shape = 's32[1]{0}', space=sflag, size = 0x4, scoped, tag = 'scoped memory for tpu_custom_call.1']
    #allocation7 [shape = 'u8[4096]{0}', space=vmem, size = 0x1000, scoped, tag = 'output window, operand 0, single buffered']
    %7 = vsyncpa [#allocation3], 0
    %8 = vsyncpa [#allocation6], 0
    %9 = vsyncpa [#allocation4], 0
    // Predicated region
    $region2: #{tpu_custom_call.1} parent=1 // pred_check
      _
    $region3: #{tpu_custom_call.1} parent=1 // pred_check_branch
      %11 = sbr.rel (0) target = $region5
    $region4: #{tpu_custom_call.1} parent=1 // pred_region
      %s12 = sadd.s32 0, 0
      %s14 = ssub.s32 128, 128
      %15 = vsyncadd [#allocation3], %s14
      %s16 = smul.addr %s12, 128
      %s17 = scalar_lea.hbm %s0, %s16
      %s19 = sshll.u32 [#allocation2], 4
      %s20 = int_to_ptr.vmem [resolvable:$true] %s19
      %22 = dma.hbm_to_vmem [thread:$0]  %s17, 128, %s20, [#allocation3]
    $region5: #{tpu_custom_call.1} parent=1 // pred_fallthru
      _
    // Predicated region
    $region6: #{tpu_custom_call.1} parent=1 // pred_check
      _
    $region7: #{tpu_custom_call.1} parent=1 // pred_check_branch
      %24 = sbr.rel (0) target = $region9
    $region8: #{tpu_custom_call.1} parent=1 // pred_region
      %s25 = sadd.s32 0, 0
      %s27 = ssub.s32 128, 128
      %28 = vsyncadd [#allocation6], %s27
      %s29 = smul.addr %s25, 128
      %s30 = scalar_lea.hbm %s1, %s29
      %s32 = sshll.u32 [#allocation5], 4
      %s33 = int_to_ptr.vmem [resolvable:$true] %s32
      %35 = dma.hbm_to_vmem [thread:$0]  %s30, 128, %s33, [#allocation6]
    $region9: #{tpu_custom_call.1} parent=1 // pred_fallthru
      _
    // Predicated region
    $region10: #{tpu_custom_call.1} parent=1 // pred_check
      _
    $region11: #{tpu_custom_call.1} parent=1 // pred_check_branch
      %37 = sbr.rel (0) target = $region13
    $region12: #{tpu_custom_call.1} parent=1 // pred_region
      %38 = dma.done [#allocation3], 128
    $region13: #{tpu_custom_call.1} parent=1 // pred_fallthru
      _
    // Predicated region
    $region14: #{tpu_custom_call.1} parent=1 // pred_check
      _
    $region15: #{tpu_custom_call.1} parent=1 // pred_check_branch
      %40 = sbr.rel (0) target = $region17
    $region16: #{tpu_custom_call.1} parent=1 // pred_region
      %41 = dma.done [#allocation6], 128
    $region17: #{tpu_custom_call.1} parent=1 // pred_fallthru
      _
    %s42 = sadd.s32 0, 0
    %s43 = sadd.s32 0, 0
    %p44 = scmp.eq.s32.totalorder 0, 0
    // Predicated region
    $region18: #{tpu_custom_call.1} parent=1 // pred_check
      %p45 = pneg %p44
    $region19: #{tpu_custom_call.1} parent=1 // pred_check_branch
      %47 = sbr.rel (%p45) target = $region21
    $region20: #{tpu_custom_call.1} parent=1 // pred_region
      %48 = vst [vmem:[#allocation7] sm:$0xff] 0.0
    $region21: #{tpu_custom_call.1} parent=1 // pred_fallthru
      _
    %v49 = vld [vmem:[#allocation2] sm:$0xff]
    %v50 = vld [vmem:[#allocation5] sm:$0xff]
    %vm51 = vcmask 130048
    %v52 = vsel %vm51, %v50, -inf
    %53 = vmax.index.xlane.f32.xlu0 %v52
    %v54 = vpop.xlane.xlu0 %53
    %v55 = vlaneseq
    %v56 = vand.u32 %v55, 127
    %vm57 = vcmp.eq.s32.totalorder %v56, %v54
    %v58 = vsel %vm57, 0.9, 0.006666667
    %v59 = vlog2.pop %v49
    %v60 = vmul.f32 %v59, 0.6931472
    %v61 = vmax.f32 %v60, -100.0
    %v62 = vsub.f32 1.0, %v49
    %v63 = vlog2.pop %v62
    %v64 = vmul.f32 %v63, 0.6931472
    %v65 = vmax.f32 %v64, -100.0
    %v66 = vsub.f32 %v61, %v65
    %v67 = vmul.f32 %v58, %v66
    %v68 = vadd.f32 %v65, %v67
    %v69 = vsub.f32 0.0, %v68
    %s70 = sadd.s32 0, 0
    %s71 = smul.u32 %s70, 8
    %v72 = vlaneseq
    %v73 = vshrl.u32 %v72, 7
    %v74 = vstv %s71
    %v75 = vadd.s32 %v74, %v73
    %vm76 = vcmp.lt.s32.totalorder %v75, 8
    %v77 = vsel %vm76, %v69, 0.0
    %v78 = vld [vmem:[#allocation7] sm:$0xff]
    %v79 = vsel %vm51, %v77, 0.0
    %80 = vadd.xlane.f32.xlu0 %v79
    %v81 = vpop.xlane.xlu0 %80
    %v82 = vrot.slane %v81, 4
    %v83 = vadd.f32 %v81, %v82
    %v84 = vrot.slane %v83, 2
    %v85 = vadd.f32 %v83, %v84
    %v86 = vrot.slane %v85, 1
    %v87 = vadd.f32 %v85, %v86
    %s88 = vtos %v87
    %v89 = vstv %s88
    %v90 = vadd.f32 %v78, %v89
    %91 = vst [vmem:[#allocation7] sm:$0xff] %v90
    // Predicated region
    $region22: #{tpu_custom_call.1} parent=1 // pred_check
      _
    $region23: #{tpu_custom_call.1} parent=1 // pred_check_branch
      %93 = sbr.rel (0) target = $region25
    $region24: #{tpu_custom_call.1} parent=1 // pred_region
      %s95 = ssub.s32 128, 128
      %96 = vsyncadd [#allocation4], %s95
      %s98 = sshll.u32 [#allocation7], 4
      %s99 = int_to_ptr.vmem [resolvable:$true] %s98
      %101 = dma.vmem_to_hbm [thread:$0]  %s99, 128, %s2, [#allocation4]
    $region25: #{tpu_custom_call.1} parent=1 // pred_fallthru
      _
    // Predicated region
    $region26: #{tpu_custom_call.1} parent=1 // pred_check
      _
    $region27: #{tpu_custom_call.1} parent=1 // pred_check_branch
      %103 = sbr.rel (0) target = $region29
    $region28: #{tpu_custom_call.1} parent=1 // pred_region
      %104 = dma.done [#allocation4], 128
    $region29: #{tpu_custom_call.1} parent=1 // pred_fallthru
      _
    %105 = vsyncpa [#allocation3], 1
    %106 = vsyncpa [#allocation6], 1
    %107 = vsyncpa [#allocation4], 1

</llo_original>
